<compile_context>
chip_gen: v7x
topology: tpu7x:2x2x1
jax: 0.10.0
libtpu: 0.0.40
codegen_flags: <defaults>
</compile_context>

<pallas_src>
import jax
import jax.numpy as jnp
from jax.experimental import pallas as pl
from jax.experimental.pallas import tpu as pltpu


def _attention_kernel(x_ref, wt_ref, b_ref, alpha_ref, res_ref):
    # x_ref:     (Bt, S, H)                batch tile of lstm_outputs (native dtype)
    # wt_ref:    (H, H)                    W^T (pre-transposed once in the wrapper)
    # b_ref:     (1, H)                    bias
    # alpha_ref: (Bt, S*H) or (Bt, S, H)   attention-weight output
    # res_ref:   (Bt, S)                   weighted-sum output
    Bt, S, H = x_ref.shape

    x = x_ref[...]                              # keep native dtype for the MXU
    wt = wt_ref[...]
    b = b_ref[...].astype(jnp.float32)          # (1, H)

    # Linear + tanh: one flattened (Bt*S, H) @ (H, H) MXU matmul, f32 accumulate.
    xf = x.reshape(Bt * S, H)
    yf = jnp.tanh(jnp.dot(xf, wt, preferred_element_type=jnp.float32) + b)
    y = yf.reshape(Bt, S, H)                    # f32

    # Softmax over the sequence axis (PyTorch dim=1), f32 elementwise math.
    m = jnp.max(y, axis=1, keepdims=True)       # (Bt, 1, H)
    e = jnp.exp(y - m)                          # (Bt, S, H)
    denom = jnp.sum(e, axis=1, keepdims=True)   # (Bt, 1, H)
    # Exact divide: pl.reciprocal(approx=False) is not the EUP vrcp fast path,
    # and a VALU divide is free filler in this HBM-bound kernel.
    alpha = e / denom                           # (Bt, S, H) f32

    # result = sum over the hidden axis of alpha * x -> (Bt, S).
    # (result traffic is H x smaller than alpha, so it keeps the simple block.)
    res = jnp.sum(alpha * x.astype(jnp.float32), axis=-1)
    res_ref[...] = res.astype(res_ref.dtype)

    if len(alpha_ref.shape) == 2:
        # Lane-dense output path (H not a multiple of 128): fill the (Bt, S*H)
        # slab with S static lane-offset stores so the output block and its
        # HBM DMA are fully dense instead of 32-of-128-lane masked.
        for s in range(S):
            alpha_ref[:, s * H:(s + 1) * H] = alpha[:, s, :].astype(alpha_ref.dtype)
    else:
        alpha_ref[...] = alpha.astype(alpha_ref.dtype)


def _chip_config():
    """Returns (vmem_limit_bytes, per-step working-set cap, tensorcores/chip)."""
    kind = ""
    try:
        kind = jax.devices()[0].device_kind.lower()
    except Exception:
        pass
    if "v7" in kind:
        # v7x: 64 MiB physical VMEM per TensorCore, 2 TensorCores per chip.
        return 44 * 1024 * 1024, 24 * 1024 * 1024, 2
    if "v5e" in kind or "v5 lite" in kind or "v6" in kind:
        # v5e / v6e: 128 MiB physical VMEM, 1 TensorCore per chip.
        return 100 * 1024 * 1024, 56 * 1024 * 1024, 1
    # Unknown generation: conservative (v7x-like) budgets are safe everywhere.
    return 44 * 1024 * 1024, 24 * 1024 * 1024, 2


def _choose_block_b(B, S, H, itemsize, cap_bytes, num_cores):
    """Pick (Bt, padded_B).

    Bt is byte-targeted (~4 MiB of x per step) and capped by the
    per-generation VMEM working-set budget; padded_B rounds B up so Bt divides
    it (the wrapper pads x and slices the outputs back)."""
    x_block_row = S * H * itemsize               # bytes of x per batch element
    # Per-batch-element VMEM working set of one grid step:
    #   double-buffered x block + double-buffered alpha block
    #   + double-buffered result block + ~4 f32 temporaries (y, e, alpha, ...)
    per_elem = 4 * S * H * itemsize + 2 * S * itemsize + 4 * S * H * 4
    # Fixed cost: double-buffered W^T and bias blocks.
    fixed = 2 * (H * H + H) * 4
    cap_bt = max(1, (cap_bytes - fixed) // per_elem)

    # Byte target: ~4 MiB of x per step runs near the HBM roofline
    # (measured: ~1 MiB tiles already reach ~85%); bigger buys little and
    # reduces pipeline overlap.
    target_bt = max(1, (4 << 20) // max(1, x_block_row))

    bt = min(B, cap_bt, target_bt)

    # Dual-TensorCore chips (v7x): keep >= 2 grid steps per core so both cores
    # get work and each still double-buffers -- but only when each step still
    # moves >= ~1 MiB of x. Single-TC chips (v5e/v6e) never shrink Bt for this.
    if num_cores > 1 and B >= 2 * num_cores:
        split_bt = B // (2 * num_cores)
        if split_bt * x_block_row >= (1 << 20):
            bt = min(bt, split_bt)

    if bt >= B:
        return B, B                              # single step, full-batch block

    # Multi-step grid: the (Bt, S) / (Bt, S*H) output blocks need Bt % 8 == 0.
    bt = max(8, (bt // 8) * 8)
    padded_B = -(-B // bt) * bt
    return bt, padded_B


def custom_attention(x, weight, bias):
    """x: (B, S, H); weight: (H, H) [out, in]; bias: (H,). Returns (result, alpha)."""
    B, S, H = x.shape
    itemsize = jnp.dtype(x.dtype).itemsize
    vmem_limit, cap_bytes, num_cores = _chip_config()
    Bt, Bp = _choose_block_b(B, S, H, itemsize, cap_bytes, num_cores)

    x_in = x if Bp == B else jnp.pad(x, ((0, Bp - B), (0, 0), (0, 0)))
    grid = (Bp // Bt,)

    wt = weight.T                       # one-time transpose outside the kernel
    bias2d = bias.reshape(1, H)

    # Lane-dense alpha only pays off when H isn't already a multiple of 128;
    # cap the unrolled per-s store loop for very long sequences.
    flatten_alpha = (H % 128 != 0) and (S <= 128)
    if flatten_alpha:
        alpha_shape = jax.ShapeDtypeStruct((Bp, S * H), x.dtype)
        alpha_spec = pl.BlockSpec((Bt, S * H), lambda i: (i, 0))
    else:
        alpha_shape = jax.ShapeDtypeStruct((Bp, S, H), x.dtype)
        alpha_spec = pl.BlockSpec((Bt, S, H), lambda i: (i, 0, 0))

    w_isz = jnp.dtype(weight.dtype).itemsize
    cost = pl.CostEstimate(
        flops=2 * Bp * S * H * H + 8 * Bp * S * H,
        transcendentals=2 * Bp * S * H,                      # tanh + exp
        bytes_accessed=(itemsize * Bp * S * H                # x read
                        + itemsize * (Bp * S * H + Bp * S)   # alpha + result writes
                        + w_isz * (H * H + H)),              # weight + bias
    )

    alpha_out, result = pl.pallas_call(
        _attention_kernel,
        out_shape=(
            alpha_shape,                                     # alpha
            jax.ShapeDtypeStruct((Bp, S), x.dtype),          # result
        ),
        grid_spec=pltpu.PrefetchScalarGridSpec(
            num_scalar_prefetch=0,
            grid=grid,
            in_specs=[
                pl.BlockSpec((Bt, S, H), lambda i: (i, 0, 0)),   # x batch tile
                # TODO(synk): for very large H (2*H*H*4 approaching the VMEM
                # budget) switch to a K-tiled 'arbitrary' grid axis with an
                # f32 accumulator instead of a VMEM-resident W^T.
                pl.BlockSpec((H, H), lambda i: (0, 0)),          # W^T broadcast
                pl.BlockSpec((1, H), lambda i: (0, 0)),          # bias broadcast
            ],
            out_specs=[
                alpha_spec,
                pl.BlockSpec((Bt, S), lambda i: (i, 0)),
            ],
        ),
        compiler_params=pltpu.CompilerParams(
            dimension_semantics=("parallel",),
            vmem_limit_bytes=vmem_limit,
        ),
        cost_estimate=cost,
    )(x_in, wt, bias2d)

    alpha = alpha_out.reshape(Bp, S, H) if flatten_alpha else alpha_out
    if Bp != B:
        alpha = alpha[:B]
        result = result[:B]
    return result, alpha


def _reference(x, weight, bias):
    # Pure-JAX reference matching the PyTorch module exactly.
    y = jnp.tanh(jnp.einsum("bsh,oh->bso", x, weight) + bias)   # (B, S, H)
    alpha = jax.nn.softmax(y, axis=1)                           # softmax over seq
    result = jnp.sum(alpha * x, axis=-1)
    return result, alpha


if __name__ == "__main__":
    B, S, H = 2, 8, 32
    key = jax.random.PRNGKey(0)
    kx, kw, kb = jax.random.split(key, 3)

    x = jax.random.normal(kx, (B, S, H), dtype=jnp.float32)
    # Deterministic parameter init (mimics nn.Linear's uniform(-1/sqrt(H), 1/sqrt(H)))
    bound = 1.0 / jnp.sqrt(jnp.float32(H))
    weight = jax.random.uniform(kw, (H, H), minval=-bound, maxval=bound,
                                dtype=jnp.float32)
    bias = jax.random.uniform(kb, (H,), minval=-bound, maxval=bound,
                              dtype=jnp.float32)

    result, alpha = custom_attention(x, weight, bias)
    jax.block_until_ready((result, alpha))

    ref_result, ref_alpha = _reference(x, weight, bias)
    assert result.shape == (B, S) and alpha.shape == (B, S, H)
    assert jnp.allclose(result, ref_result, atol=1e-5, rtol=1e-5)
    assert jnp.allclose(alpha, ref_alpha, atol=1e-5, rtol=1e-5)

    print("KERNEL_OK")
</pallas_src>

<mosaic_0001>
module attributes {stable_mosaic.version = 11 : i64} {
  func.func @_attention_kernel(%arg0: i32, %arg1: memref<2x8x32xf32, #tpu.memory_space<vmem>>, %arg2: memref<32x32xf32, #tpu.memory_space<vmem>>, %arg3: memref<1x32xf32, #tpu.memory_space<vmem>>, %arg4: memref<2x256xf32, #tpu.memory_space<vmem>>, %arg5: memref<2x8xf32, #tpu.memory_space<vmem>>) attributes {dimension_semantics = [#tpu.dimension_semantics<parallel>], iteration_bounds = array<i64: 1>, scalar_prefetch = 0 : i64, scratch_operands = 0 : i64, tpu.core_type = #tpu.core_type<tc>, window_params = [{transform_indices = @transform_0, window_bounds = array<i64: 2, 8, 32>}, {pipeline_mode = #tpu.pipeline_mode<synchronous>, transform_indices = @transform_1, window_bounds = array<i64: 32, 32>}, {pipeline_mode = #tpu.pipeline_mode<synchronous>, transform_indices = @transform_2, window_bounds = array<i64: 1, 32>}, {transform_indices = @transform_3, window_bounds = array<i64: 2, 256>}, {transform_indices = @transform_4, window_bounds = array<i64: 2, 8>}]} {
    %c0 = arith.constant 0 : index
    %c0_0 = arith.constant 0 : index
    %c0_1 = arith.constant 0 : index
    %0 = vector.load %arg1[%c0, %c0_0, %c0_1] : memref<2x8x32xf32, #tpu.memory_space<vmem>>, vector<2x8x32xf32>
    %c0_2 = arith.constant 0 : index
    %c0_3 = arith.constant 0 : index
    %1 = vector.load %arg2[%c0_2, %c0_3] : memref<32x32xf32, #tpu.memory_space<vmem>>, vector<32x32xf32>
    %c0_4 = arith.constant 0 : index
    %c0_5 = arith.constant 0 : index
    %2 = vector.load %arg3[%c0_4, %c0_5] : memref<1x32xf32, #tpu.memory_space<vmem>>, vector<1x32xf32>
    %3 = vector.shape_cast %0 : vector<2x8x32xf32> to vector<16x32xf32>
    %cst = arith.constant dense<0.000000e+00> : vector<16x32xf32>
    %4 = tpu.matmul %3, %1, %cst {dimension_numbers = #tpu.dot_dimension_numbers<[1], [0], [0], [1], [0, 0, 1, 1], [], []>} : vector<16x32xf32>, vector<32x32xf32>, vector<16x32xf32> -> vector<16x32xf32>
    %5 = vector.broadcast %2 : vector<1x32xf32> to vector<16x32xf32>
    %6 = arith.addf %4, %5 : vector<16x32xf32>
    %7 = math.tanh %6 : vector<16x32xf32>
    %8 = vector.shape_cast %7 : vector<16x32xf32> to vector<2x8x32xf32>
    %cst_6 = arith.constant dense<0xFF800000> : vector<2x32xf32>
    %9 = vector.multi_reduction <maximumf>, %8, %cst_6 [1] : vector<2x8x32xf32> to vector<2x32xf32>
    %10 = vector.shape_cast %9 : vector<2x32xf32> to vector<2x1x32xf32>
    %11 = vector.broadcast %10 : vector<2x1x32xf32> to vector<2x8x32xf32>
    %12 = arith.subf %8, %11 : vector<2x8x32xf32>
    %13 = math.exp %12 : vector<2x8x32xf32>
    %cst_7 = arith.constant dense<0.000000e+00> : vector<2x32xf32>
    %14 = vector.multi_reduction <add>, %13, %cst_7 [1] : vector<2x8x32xf32> to vector<2x32xf32>
    %15 = vector.shape_cast %14 : vector<2x32xf32> to vector<2x1x32xf32>
    %16 = vector.broadcast %15 : vector<2x1x32xf32> to vector<2x8x32xf32>
    %17 = arith.divf %13, %16 : vector<2x8x32xf32>
    %18 = arith.mulf %17, %0 : vector<2x8x32xf32>
    %cst_8 = arith.constant dense<0.000000e+00> : vector<2x8xf32>
    %19 = vector.multi_reduction <add>, %18, %cst_8 [2] : vector<2x8x32xf32> to vector<2x8xf32>
    %c0_9 = arith.constant 0 : index
    %c0_10 = arith.constant 0 : index
    %20 = vector.load %arg5[%c0_9, %c0_10] : memref<2x8xf32, #tpu.memory_space<vmem>>, vector<2x8xf32>
    tpu.vector_store %arg5[%c0_9, %c0_10], %19 {strides = array<i32>} : memref<2x8xf32, #tpu.memory_space<vmem>>, vector<2x8xf32>,
    %21 = vector.extract_strided_slice %17 {offsets = [0, 0, 0], sizes = [2, 1, 32], strides = [1, 1, 1]} : vector<2x8x32xf32> to vector<2x1x32xf32>
    %22 = vector.shape_cast %21 : vector<2x1x32xf32> to vector<2x32xf32>
    %c0_11 = arith.constant 0 : index
    %c0_12 = arith.constant 0 : index
    %23 = vector.load %arg4[%c0_11, %c0_12] : memref<2x256xf32, #tpu.memory_space<vmem>>, vector<2x32xf32>
    tpu.vector_store %arg4[%c0_11, %c0_12], %22 {strides = array<i32>} : memref<2x256xf32, #tpu.memory_space<vmem>>, vector<2x32xf32>,
    %24 = vector.extract_strided_slice %17 {offsets = [0, 1, 0], sizes = [2, 1, 32], strides = [1, 1, 1]} : vector<2x8x32xf32> to vector<2x1x32xf32>
    %25 = vector.shape_cast %24 : vector<2x1x32xf32> to vector<2x32xf32>
    %c0_13 = arith.constant 0 : index
    %c32 = arith.constant 32 : index
    %26 = vector.load %arg4[%c0_13, %c32] : memref<2x256xf32, #tpu.memory_space<vmem>>, vector<2x32xf32>
    tpu.vector_store %arg4[%c0_13, %c32], %25 {strides = array<i32>} : memref<2x256xf32, #tpu.memory_space<vmem>>, vector<2x32xf32>,
    %27 = vector.extract_strided_slice %17 {offsets = [0, 2, 0], sizes = [2, 1, 32], strides = [1, 1, 1]} : vector<2x8x32xf32> to vector<2x1x32xf32>
    %28 = vector.shape_cast %27 : vector<2x1x32xf32> to vector<2x32xf32>
    %c0_14 = arith.constant 0 : index
    %c64 = arith.constant 64 : index
    %29 = vector.load %arg4[%c0_14, %c64] : memref<2x256xf32, #tpu.memory_space<vmem>>, vector<2x32xf32>
    tpu.vector_store %arg4[%c0_14, %c64], %28 {strides = array<i32>} : memref<2x256xf32, #tpu.memory_space<vmem>>, vector<2x32xf32>,
    %30 = vector.extract_strided_slice %17 {offsets = [0, 3, 0], sizes = [2, 1, 32], strides = [1, 1, 1]} : vector<2x8x32xf32> to vector<2x1x32xf32>
    %31 = vector.shape_cast %30 : vector<2x1x32xf32> to vector<2x32xf32>
    %c0_15 = arith.constant 0 : index
    %c96 = arith.constant 96 : index
    %32 = vector.load %arg4[%c0_15, %c96] : memref<2x256xf32, #tpu.memory_space<vmem>>, vector<2x32xf32>
    tpu.vector_store %arg4[%c0_15, %c96], %31 {strides = array<i32>} : memref<2x256xf32, #tpu.memory_space<vmem>>, vector<2x32xf32>,
    %33 = vector.extract_strided_slice %17 {offsets = [0, 4, 0], sizes = [2, 1, 32], strides = [1, 1, 1]} : vector<2x8x32xf32> to vector<2x1x32xf32>
    %34 = vector.shape_cast %33 : vector<2x1x32xf32> to vector<2x32xf32>
    %c0_16 = arith.constant 0 : index
    %c128 = arith.constant 128 : index
    %35 = vector.load %arg4[%c0_16, %c128] : memref<2x256xf32, #tpu.memory_space<vmem>>, vector<2x32xf32>
    tpu.vector_store %arg4[%c0_16, %c128], %34 {strides = array<i32>} : memref<2x256xf32, #tpu.memory_space<vmem>>, vector<2x32xf32>,
    %36 = vector.extract_strided_slice %17 {offsets = [0, 5, 0], sizes = [2, 1, 32], strides = [1, 1, 1]} : vector<2x8x32xf32> to vector<2x1x32xf32>
    %37 = vector.shape_cast %36 : vector<2x1x32xf32> to vector<2x32xf32>
    %c0_17 = arith.constant 0 : index
    %c160 = arith.constant 160 : index
    %38 = vector.load %arg4[%c0_17, %c160] : memref<2x256xf32, #tpu.memory_space<vmem>>, vector<2x32xf32>
    tpu.vector_store %arg4[%c0_17, %c160], %37 {strides = array<i32>} : memref<2x256xf32, #tpu.memory_space<vmem>>, vector<2x32xf32>,
    %39 = vector.extract_strided_slice %17 {offsets = [0, 6, 0], sizes = [2, 1, 32], strides = [1, 1, 1]} : vector<2x8x32xf32> to vector<2x1x32xf32>
    %40 = vector.shape_cast %39 : vector<2x1x32xf32> to vector<2x32xf32>
    %c0_18 = arith.constant 0 : index
    %c192 = arith.constant 192 : index
    %41 = vector.load %arg4[%c0_18, %c192] : memref<2x256xf32, #tpu.memory_space<vmem>>, vector<2x32xf32>
    tpu.vector_store %arg4[%c0_18, %c192], %40 {strides = array<i32>} : memref<2x256xf32, #tpu.memory_space<vmem>>, vector<2x32xf32>,
    %42 = vector.extract_strided_slice %17 {offsets = [0, 7, 0], sizes = [2, 1, 32], strides = [1, 1, 1]} : vector<2x8x32xf32> to vector<2x1x32xf32>
    %43 = vector.shape_cast %42 : vector<2x1x32xf32> to vector<2x32xf32>
    %c0_19 = arith.constant 0 : index
    %c224 = arith.constant 224 : index
    %44 = vector.load %arg4[%c0_19, %c224] : memref<2x256xf32, #tpu.memory_space<vmem>>, vector<2x32xf32>
    tpu.vector_store %arg4[%c0_19, %c224], %43 {strides = array<i32>} : memref<2x256xf32, #tpu.memory_space<vmem>>, vector<2x32xf32>,
    return
  }
  func.func @transform_0(%arg0: i32) -> (i32, i32, i32) {
    %c0_i32 = arith.constant 0 : i32
    %c0_i32_0 = arith.constant 0 : i32
    %c0_i32_1 = arith.constant 0 : i32
    return %arg0, %c0_i32, %c0_i32_0 : i32, i32, i32
  }
  func.func @transform_1(%arg0: i32) -> (i32, i32) {
    %c0_i32 = arith.constant 0 : i32
    %c0_i32_0 = arith.constant 0 : i32
    %c0_i32_1 = arith.constant 0 : i32
    return %c0_i32, %c0_i32_0 : i32, i32
  }
  func.func @transform_2(%arg0: i32) -> (i32, i32) {
    %c0_i32 = arith.constant 0 : i32
    %c0_i32_0 = arith.constant 0 : i32
    %c0_i32_1 = arith.constant 0 : i32
    return %c0_i32, %c0_i32_0 : i32, i32
  }
  func.func @transform_3(%arg0: i32) -> (i32, i32) {
    %c0_i32 = arith.constant 0 : i32
    %c0_i32_0 = arith.constant 0 : i32
    return %arg0, %c0_i32 : i32, i32
  }
  func.func @transform_4(%arg0: i32) -> (i32, i32) {
    %c0_i32 = arith.constant 0 : i32
    %c0_i32_0 = arith.constant 0 : i32
    return %arg0, %c0_i32 : i32, i32
  }
}

</mosaic_0001>

<llo_original>
// kernel: tpu_custom_call.1
$region0: #{tpu_custom_call.1}
  #allocation0 [shape = 'u32[]', space=smem, size = 0x4, offset = 0x4, fixed_abs, tag = 'smem constant byte address 0x4 - core index']
  #allocation1 [shape = 'u32[144,128]{1,0:T(1,128)}', space=vmem, size = 0x12000, scoped, tag = 'internal scratch']
  %s0 = inlined_call_operand.hbm [shape: f32[2,8,32], index: 0, kind: input, shape index: {}]
  %s1 = inlined_call_operand.hbm [shape: f32[32,32], index: 1, kind: input, shape index: {}]
  %s2 = inlined_call_operand.vmem [shape: f32[1,32], index: 2, kind: input, shape index: {}]
  %s3 = inlined_call_operand.hbm [shape: f32[2,256], index: 3, kind: output, shape index: {0}]
  %s4 = inlined_call_operand.hbm [shape: f32[2,8], index: 4, kind: output, shape index: {1}]
  %5 = xla_tuple %s3, %s4
  %s6 = sld [smem:[#allocation0]]
  $region38: #{tpu_custom_call.1} parent=0
    _
  %s8 = ssub.s32 1, %s6
  %s9 = scalar_select 0, %s8, %s6
  $region1: #{tpu_custom_call.1} parent=0
    #allocation2 [shape = 'u8[8192]{0}', space=vmem, size = 0x2000, scoped, tag = 'input window, operand 0, single buffered']
    #allocation3 [shape = 's32[1]{0}', space=sflag, size = 0x4, scoped, tag = 'scoped memory for tpu_custom_call.1']
    #allocation4 [shape = 's32[1]{0}', space=sflag, size = 0x4, scoped, tag = 'scoped memory for tpu_custom_call.1']
    #allocation5 [shape = 'u8[16384]{0}', space=vmem, size = 0x4000, scoped, tag = 'input window, operand 1, single buffered']
    #allocation6 [shape = 's32[1]{0}', space=sflag, size = 0x4, scoped, tag = 'scoped memory for tpu_custom_call.1']
    #allocation7 [shape = 'u8[2048]{0}', space=vmem, size = 0x800, scoped, tag = 'output window, operand 0, single buffered']
    #allocation8 [shape = 'u8[1024]{0}', space=vmem, size = 0x400, scoped, tag = 'output window, operand 1, single buffered']
    #allocation9 [shape = 's32[1]{0}', space=sflag, size = 0x4, scoped, tag = 'scoped memory for tpu_custom_call.1']
    %10 = vsyncpa [#allocation3], 0
    %11 = vsyncpa [#allocation6], 0
    %12 = vsyncpa [#allocation4], 0
    %13 = vsyncpa [#allocation9], 0
    // Predicated region
    $region2: #{tpu_custom_call.1} parent=1 // pred_check
      _
    $region3: #{tpu_custom_call.1} parent=1 // pred_check_branch
      %15 = sbr.rel (0) target = $region5
    $region4: #{tpu_custom_call.1} parent=1 // pred_region
      %s17 = ssub.s32 256, 256
      %18 = vsyncadd [#allocation3], %s17
      %s19 = sshll.u32 [#allocation2], 4
      %s20 = int_to_ptr.vmem [resolvable:$true] %s19
      %25 = dma.hbm_to_vmem [thread:$0]  %s0, 256, %s20, [#allocation3], 128, 128, 8
    $region5: #{tpu_custom_call.1} parent=1 // pred_fallthru
      _
    // Predicated region
    $region6: #{tpu_custom_call.1} parent=1 // pred_check
      _
    $region7: #{tpu_custom_call.1} parent=1 // pred_check_branch
      %27 = sbr.rel (0) target = $region9
    $region8: #{tpu_custom_call.1} parent=1 // pred_region
      %s29 = ssub.s32 512, 512
      %30 = vsyncadd [#allocation6], %s29
      %s31 = sshll.u32 [#allocation5], 4
      %s32 = int_to_ptr.vmem [resolvable:$true] %s31
      %37 = dma.hbm_to_vmem [thread:$0]  %s1, 512, %s32, [#allocation6], 128, 128, 8
    $region9: #{tpu_custom_call.1} parent=1 // pred_fallthru
      _
    // Predicated region
    $region10: #{tpu_custom_call.1} parent=1 // pred_check
      _
    $region11: #{tpu_custom_call.1} parent=1 // pred_check_branch
      %39 = sbr.rel (0) target = $region13
    $region12: #{tpu_custom_call.1} parent=1 // pred_region
      _
    $region13: #{tpu_custom_call.1} parent=1 // pred_fallthru
      _
    // Predicated region
    $region14: #{tpu_custom_call.1} parent=1 // pred_check
      _
    $region15: #{tpu_custom_call.1} parent=1 // pred_check_branch
      %41 = sbr.rel (0) target = $region17
    $region16: #{tpu_custom_call.1} parent=1 // pred_region
      %42 = dma.done [#allocation3], 256
    $region17: #{tpu_custom_call.1} parent=1 // pred_fallthru
      _
    // Predicated region
    $region18: #{tpu_custom_call.1} parent=1 // pred_check
      _
    $region19: #{tpu_custom_call.1} parent=1 // pred_check_branch
      %44 = sbr.rel (0) target = $region21
    $region20: #{tpu_custom_call.1} parent=1 // pred_region
      %45 = dma.done [#allocation6], 512
    $region21: #{tpu_custom_call.1} parent=1 // pred_fallthru
      _
    %v46 = vld [vmem:[#allocation2] sm:$0xff]
    %v47 = vld [vmem:[#allocation2 + $0x8] sm:$0xff]
    %v48 = vld [vmem:[#allocation5] sm:$0xff]
    %v49 = vld [vmem:[#allocation5 + $0x8] sm:$0xff]
    %v50 = vld [vmem:[#allocation5 + $0x10] sm:$0xff]
    %v51 = vld [vmem:[#allocation5 + $0x18] sm:$0xff]
    %v52 = vld [vmem:[%s2] sm:$0x1]
    %v54 = vlaneseq
    %v55 = vshrl.u32 %v54, 7
    %v56 = vsub.s32 0, %v55
    %v57 = vrot.slane %v52, %v56
    %vm59 = vcmask 261120
    %v61 = vsel %vm59, %v46, 0
    %v64 = vsel %vm59, %v47, 0
    %66 = vmatprep.subr.mxu0 0.0
    %67 = vmatpush1.msra.mxu0 %v48
    %68 = vmatprep.subr.mxu0 0.0
    %69 = vmatpush1.msra.mxu0 %v49
    %70 = vmatprep.subr.mxu0 0.0
    %71 = vmatpush1.msra.mxu0 %v50
    %72 = vmatprep.subr.mxu0 0.0
    %73 = vmatpush1.msra.mxu0 %v51
    %74 = vmatprep.subr.mxu0 0.0
    %75 = vmatpush1.msra.mxu0 0.0
    %76 = vmatprep.subr.mxu0 0.0
    %77 = vmatpush1.msra.mxu0 0.0
    %78 = vmatprep.subr.mxu0 0.0
    %79 = vmatpush1.msra.mxu0 0.0
    %80 = vmatprep.subr.mxu0 0.0
    %81 = vmatpush1.msra.mxu0 0.0
    %82 = vmatprep.subr.mxu0 0.0
    %83 = vmatpush1.msra.mxu0 0.0
    %84 = vmatprep.subr.mxu0 0.0
    %85 = vmatpush1.msra.mxu0 0.0
    %86 = vmatprep.subr.mxu0 0.0
    %87 = vmatpush1.msra.mxu0 0.0
    %88 = vmatprep.subr.mxu0 0.0
    %89 = vmatpush1.msra.mxu0 0.0
    %90 = vmatprep.subr.mxu0 0.0
    %91 = vmatpush1.msra.mxu0 0.0
    %92 = vmatprep.subr.mxu0 0.0
    %93 = vmatpush1.msra.mxu0 0.0
    %94 = vmatprep.subr.mxu0 0.0
    %95 = vmatpush1.msra.mxu0 0.0
    %96 = vmatprep.subr.mxu0 0.0
    %97 = vmatpush1.msra.mxu0 0.0
    %98 = vmatprep.subr.mxu0 0.0
    %99 = vmatpush1.msra.mxu0 0.0
    %100 = vmatprep.subr.mxu0 0.0
    %101 = vmatpush1.msra.mxu0 0.0
    %102 = vmatprep.subr.mxu0 0.0
    %103 = vmatpush1.msra.mxu0 0.0
    %104 = vmatprep.subr.mxu0 0.0
    %105 = vmatpush1.msra.mxu0 0.0
    %106 = vmatprep.subr.mxu0 0.0
    %107 = vmatpush1.msra.mxu0 0.0
    %108 = vmatprep.subr.mxu0 0.0
    %109 = vmatpush1.msra.mxu0 0.0
    %110 = vmatprep.subr.mxu0 0.0
    %111 = vmatpush1.msra.mxu0 0.0
    %112 = vmatprep.subr.mxu0 0.0
    %113 = vmatpush1.msra.mxu0 0.0
    %114 = vmatprep.subr.mxu0 0.0
    %115 = vmatpush1.msra.mxu0 0.0
    %116 = vmatprep.subr.mxu0 0.0
    %117 = vmatpush1.msra.mxu0 0.0
    %118 = vmatprep.subr.mxu0 0.0
    %119 = vmatpush1.msra.mxu0 0.0
    %120 = vmatprep.subr.mxu0 0.0
    %121 = vmatpush1.msra.mxu0 0.0
    %122 = vmatprep.subr.mxu0 0.0
    %123 = vmatpush1.msra.mxu0 0.0
    %124 = vmatprep.subr.mxu0 0.0
    %125 = vmatpush1.msra.mxu0 0.0
    %126 = vmatprep.subr.mxu0 0.0
    %127 = vmatpush1.msra.mxu0 0.0
    %128 = vmatprep.subr.mxu0 0.0
    %129 = vmatpush1.msra.mxu0 0.0
    %130 = vmatprep.mubr.f32.mxu0 0.0
    %131 = vmatmul.mubr.f32.gmra.mrb[0].mxu0 %v61
    %v132 = vpop.f32.mrb[0].mxu0
    %v133 = vadd.f32 %v57, %v132
    %v134 = vpop.f32.mrb[0].mxu0
    %135 = vmatprep.mubr.f32.mxu0 0.0
    %136 = vmatmul.mubr.f32.gmra.mrb[0].mxu0 %v64
    %v137 = vpop.f32.mrb[0].mxu0
    %v138 = vadd.f32 %v57, %v137
    %v139 = vpop.f32.mrb[0].mxu0
    %140 = vdwg.mxu0
    %v141 = vtanh.pop %v133
    %v142 = vtanh.pop %v138
    %v143 = vsel %vm59, %v141, -inf
    %v144 = vrot.slane %v143, 4
    %v145 = vmax.f32 %v143, %v144
    %v146 = vrot.slane %v145, 2
    %v147 = vmax.f32 %v145, %v146
    %v148 = vrot.slane %v147, 1
    %v149 = vmax.f32 %v147, %v148
    %v150 = vsel %vm59, %v142, -inf
    %v151 = vrot.slane %v150, 4
    %v152 = vmax.f32 %v150, %v151
    %v153 = vrot.slane %v152, 2
    %v154 = vmax.f32 %v152, %v153
    %v155 = vrot.slane %v154, 1
    %v156 = vmax.f32 %v154, %v155
    %v157 = vsub.f32 %v141, %v149
    %v158 = vsub.f32 %v142, %v156
    %v159 = vmul.f32 %v157, 1.442695
    %v160 = vpow.pop %v159
    %v161 = vmul.f32 %v158, 1.442695
    %v162 = vpow.pop %v161
    %v163 = vsel %vm59, %v160, 0.0
    %v164 = vrot.slane %v163, 4
    %v165 = vadd.f32 %v163, %v164
    %v166 = vrot.slane %v165, 2
    %v167 = vadd.f32 %v165, %v166
    %v168 = vrot.slane %v167, 1
    %v169 = vadd.f32 %v167, %v168
    %v170 = vsel %vm59, %v162, 0.0
    %v171 = vrot.slane %v170, 4
    %v172 = vadd.f32 %v170, %v171
    %v173 = vrot.slane %v172, 2
    %v174 = vadd.f32 %v172, %v173
    %v175 = vrot.slane %v174, 1
    %v176 = vadd.f32 %v174, %v175
    %v177 = vrcp.pop %v169
    %v178 = vmul.f32 %v160, %v177
    %v179 = vrcp.pop %v176
    %v180 = vmul.f32 %v162, %v179
    %v181 = vmul.f32 %v178, %v46
    %v182 = vmul.f32 %v180, %v47
    %v183 = vsel %vm59, %v181, 0.0
    %184 = vadd.xlane.f32.xlu0 %v183
    %v185 = vpop.xlane.xlu0 %184
    %v186 = vsel %vm59, %v182, 0.0
    %187 = vadd.xlane.f32.xlu0 %v186
    %v188 = vpop.xlane.xlu0 %187
    %v191 = vlaneseq
    %v192 = vand.u32 %v191, 127
    %v193 = vlaneseq
    %v194 = vshrl.u32 %v193, 7
    %v195 = vsub.s32 %v192, %v194
    %v196 = vrot.slane %v185, %v195
    %v197 = vlaneseq
    %v198 = vshrl.u32 %v197, 7
    %v199 = vsub.s32 %v192, %v198
    %v200 = vrot.slane %v188, %v199
    %vm201 = vcmask 1041409
    %v202 = vsel %vm201, %v200, %v196
    %vm204 = vcmask 58368
    %205 = vst.msk [vmem:[#allocation8] sm:$0x3] %vm204, %v202
    %v209 = vunpack.c.l.s4 1983009808
    %v210 = vunpack.c.0.s8 %v209
    %v211 = vlaneseq
    %v212 = vshrl.u32 %v211, 7
    %v213 = vsub.s32 %v210, %v212
    %v214 = vrot.slane %v178, %v213
    %v216 = vunpack.c.l.s4 1983009808
    %v217 = vunpack.c.0.s8 %v216
    %v218 = vlaneseq
    %v219 = vshrl.u32 %v218, 7
    %v220 = vsub.s32 %v217, %v219
    %v221 = vrot.slane %v180, %v220
    %vm222 = vcmask 1044484
    %v223 = vsel %vm222, %v214, %v214
    %vm224 = vcmask 1046534
    %v225 = vsel %vm224, %v214, %v223
    %v226 = vrot.slane %v221, 7
    %v227 = vsel %vm201, %v226, %v225
    %vm228 = vcmask 1043459
    %v229 = vsel %vm228, %v226, %v227
    %vm230 = vcmask 1045509
    %v231 = vsel %vm230, %v226, %v229
    %vm232 = vcmask 1047559
    %v233 = vsel %vm232, %v226, %v231
    %vm235 = vcmask 254976
    %236 = vst.msk [vmem:[#allocation7] sm:$0x3] %vm235, %v233
    %v237 = vrot.slane %v214, 1
    %v238 = vsel %vm222, %v237, %v237
    %v239 = vsel %vm224, %v237, %v238
    %v240 = vsel %vm201, %v221, %v239
    %v241 = vsel %vm228, %v221, %v240
    %v242 = vsel %vm230, %v221, %v241
    %v243 = vsel %vm232, %v221, %v242
    %244 = vrot.lane.b32.xlu0 %v243, 32
    %v245 = vpop.permute.xlu0 %244
    %vm247 = vcmask 517376
    %248 = vst.msk [vmem:[#allocation7] sm:$0x3] %vm247, %v245
    %v249 = vcombine.high %v214, %v214
    %v250 = vcombine.high %v221, %v221
    %v251 = vsel %vm222, %v249, %v249
    %v252 = vsel %vm224, %v249, %v251
    %v253 = vrot.slane %v250, 7
    %v254 = vsel %vm201, %v253, %v252
    %v255 = vsel %vm228, %v253, %v254
    %v256 = vsel %vm230, %v253, %v255
    %v257 = vsel %vm232, %v253, %v256
    %258 = vrot.lane.b32.xlu0 %v257, 64
    %v259 = vpop.permute.xlu0 %258
    %vm261 = vcmask 779776
    %262 = vst.msk [vmem:[#allocation7] sm:$0x3] %vm261, %v259
    %v263 = vrot.slane %v249, 1
    %v264 = vsel %vm222, %v263, %v263
    %v265 = vsel %vm224, %v263, %v264
    %v266 = vsel %vm201, %v250, %v265
    %v267 = vsel %vm228, %v250, %v266
    %v268 = vsel %vm230, %v250, %v267
    %v269 = vsel %vm232, %v250, %v268
    %270 = vrot.lane.b32.xlu0 %v269, 96
    %v271 = vpop.permute.xlu0 %270
    %vm273 = vcmask 1042176
    %274 = vst.msk [vmem:[#allocation7] sm:$0x3] %vm273, %v271
    %v275 = vcombine.high %v178, %v178
    %v277 = vunpack.c.l.s4 1983009808
    %v278 = vunpack.c.0.s8 %v277
    %v279 = vlaneseq
    %v280 = vshrl.u32 %v279, 7
    %v281 = vsub.s32 %v278, %v280
    %v282 = vrot.slane %v275, %v281
    %v283 = vcombine.high %v180, %v180
    %v285 = vunpack.c.l.s4 1983009808
    %v286 = vunpack.c.0.s8 %v285
    %v287 = vlaneseq
    %v288 = vshrl.u32 %v287, 7
    %v289 = vsub.s32 %v286, %v288
    %v290 = vrot.slane %v283, %v289
    %v291 = vsel %vm222, %v282, %v282
    %v292 = vsel %vm224, %v282, %v291
    %v293 = vrot.slane %v290, 7
    %v294 = vsel %vm201, %v293, %v292
    %v295 = vsel %vm228, %v293, %v294
    %v296 = vsel %vm230, %v293, %v295
    %v297 = vsel %vm232, %v293, %v296
    %299 = vst.msk [vmem:[#allocation7 + $0x2] sm:$0x3] %vm235, %v297
    %v300 = vrot.slane %v282, 1
    %v301 = vsel %vm222, %v300, %v300
    %v302 = vsel %vm224, %v300, %v301
    %v303 = vsel %vm201, %v290, %v302
    %v304 = vsel %vm228, %v290, %v303
    %v305 = vsel %vm230, %v290, %v304
    %v306 = vsel %vm232, %v290, %v305
    %307 = vrot.lane.b32.xlu0 %v306, 32
    %v308 = vpop.permute.xlu0 %307
    %310 = vst.msk [vmem:[#allocation7 + $0x2] sm:$0x3] %vm247, %v308
    %v311 = vcombine.high %v282, %v282
    %v312 = vcombine.high %v290, %v290
    %v313 = vsel %vm222, %v311, %v311
    %v314 = vsel %vm224, %v311, %v313
    %v315 = vrot.slane %v312, 7
    %v316 = vsel %vm201, %v315, %v314
    %v317 = vsel %vm228, %v315, %v316
    %v318 = vsel %vm230, %v315, %v317
    %v319 = vsel %vm232, %v315, %v318
    %320 = vrot.lane.b32.xlu0 %v319, 64
    %v321 = vpop.permute.xlu0 %320
    %323 = vst.msk [vmem:[#allocation7 + $0x2] sm:$0x3] %vm261, %v321
    %v324 = vrot.slane %v311, 1
    %v325 = vsel %vm222, %v324, %v324
    %v326 = vsel %vm224, %v324, %v325
    %v327 = vsel %vm201, %v312, %v326
    %v328 = vsel %vm228, %v312, %v327
    %v329 = vsel %vm230, %v312, %v328
    %v330 = vsel %vm232, %v312, %v329
    %331 = vrot.lane.b32.xlu0 %v330, 96
    %v332 = vpop.permute.xlu0 %331
    %334 = vst.msk [vmem:[#allocation7 + $0x2] sm:$0x3] %vm273, %v332
    // Predicated region
    $region22: #{tpu_custom_call.1} parent=1 // pred_check
      _
    $region23: #{tpu_custom_call.1} parent=1 // pred_check_branch
      %336 = sbr.rel (0) target = $region25
    $region24: #{tpu_custom_call.1} parent=1 // pred_region
      %s338 = ssub.s32 64, 64
      %339 = vsyncadd [#allocation4], %s338
      %s341 = sshll.u32 [#allocation7], 4
      %s342 = int_to_ptr.vmem [resolvable:$true] %s341
      %344 = dma.vmem_to_hbm [thread:$0]  %s342, 64, %s3, [#allocation4]
    $region25: #{tpu_custom_call.1} parent=1 // pred_fallthru
      _
    // Predicated region
    $region26: #{tpu_custom_call.1} parent=1 // pred_check
      _
    $region27: #{tpu_custom_call.1} parent=1 // pred_check_branch
      %346 = sbr.rel (0) target = $region29
    $region28: #{tpu_custom_call.1} parent=1 // pred_region
      %s348 = ssub.s32 32, 32
      %349 = vsyncadd [#allocation9], %s348
      %s351 = sshll.u32 [#allocation8], 4
      %s352 = int_to_ptr.vmem [resolvable:$true] %s351
      %354 = dma.vmem_to_hbm [thread:$0]  %s352, 32, %s4, [#allocation9]
    $region29: #{tpu_custom_call.1} parent=1 // pred_fallthru
      _
    // Predicated region
    $region30: #{tpu_custom_call.1} parent=1 // pred_check
      _
    $region31: #{tpu_custom_call.1} parent=1 // pred_check_branch
      %356 = sbr.rel (0) target = $region33
    $region32: #{tpu_custom_call.1} parent=1 // pred_region
      %357 = dma.done [#allocation4], 64
    $region33: #{tpu_custom_call.1} parent=1 // pred_fallthru
      _
    // Predicated region
    $region34: #{tpu_custom_call.1} parent=1 // pred_check
      _
    $region35: #{tpu_custom_call.1} parent=1 // pred_check_branch
      %359 = sbr.rel (0) target = $region37
    $region36: #{tpu_custom_call.1} parent=1 // pred_region
      %360 = dma.done [#allocation9], 32
    $region37: #{tpu_custom_call.1} parent=1 // pred_fallthru
      _
    %361 = vsyncpa [#allocation3], 1
    %362 = vsyncpa [#allocation6], 1
    %363 = vsyncpa [#allocation4], 1
    %364 = vsyncpa [#allocation9], 1

</llo_original>
